<compile_context>
chip_gen: v5e
topology: v5e:2x2
jax: 0.10.0
libtpu: 0.0.40
codegen_flags: <defaults>
</compile_context>

<pallas_src>
import functools

import jax
import jax.numpy as jnp
from jax import lax
from jax.experimental import pallas as pl
from jax.experimental.pallas import tpu as pltpu


_LANE = 128                    # vreg lane width
_SUBLANE = 8                   # f32 sublane count
_BLOCK_BYTES_CAP = 2 << 20     # <= 2 MiB / block: safe with double-buffering on v5e
_VMEM_LIMIT_BYTES = 32 << 20   # explicit scoped-VMEM request (fits v5e/v6e/v7x)
_MIN_GROUPS_PER_STEP = 8       # lane-dense: >= 8 lane-groups (1024 rows) per grid step
_MIN_ROWS_PER_STEP = 1024      # row-major: >= 1024 rows per grid step before splitting


def _budget_bisect_kernel(x_ref, o_ref, *, budget, n_iter, d, red_axis,
                          unroll, use_mxu):
    """Bisection root-finding for tau on one tile; rows are independent.

    red_axis=0  -> lane-dense layout, tile is (D, TR): rows on lanes.
    red_axis=-1 -> row-major layout,  tile is (TM, D): D on lanes.
    use_mxu     -> (row-major only) do the D-reduction as an MXU dot vs ones.
    """
    x = x_ref[...].astype(jnp.float32)

    max_val = jnp.max(x, axis=red_axis, keepdims=True)
    min_val = jnp.min(x, axis=red_axis, keepdims=True)
    tau_lo = min_val - budget / d
    tau_hi = max_val - budget / d
    dm = tau_hi - tau_lo

    if use_mxu:
        # Hoisted constant; the per-iteration lane reduce goes to the MXU
        # (idle in this kernel) with f32-accurate HIGHEST precision so the
        # sign test on the row sum is not perturbed.
        ones_col = jnp.ones((x.shape[-1], 1), jnp.float32)

    def row_sum(p_m):
        if use_mxu:
            return lax.dot_general(
                p_m, ones_col, (((1,), (0,)), ((), ())),
                precision=lax.Precision.HIGHEST,
                preferred_element_type=jnp.float32)
        return jnp.sum(p_m, axis=red_axis, keepdims=True)

    # One bisection step.  Carry only per-row scalars (tau_lo, dm, tau_m); the
    # full-tile p_m is NOT carried.
    def one_step(carry):
        tau_lo, dm, _tau_m = carry
        dm = dm * 0.5
        tau_m = tau_lo + dm
        p_m = jnp.clip(x - tau_m, 0.0, 1.0)
        # budget folded into the compare (saves one VALU op per scalar vreg).
        tau_lo = jnp.where(row_sum(p_m) >= budget, tau_m, tau_lo)
        return (tau_lo, dm, tau_m)

    unroll = max(1, int(unroll))
    n_major = n_iter // unroll
    n_rem = n_iter - n_major * unroll

    def body(_, carry):
        for _ in range(unroll):        # manual unroll inside the fori_loop body
            carry = one_step(carry)
        return carry

    carry = (tau_lo, dm, tau_lo)       # tau_m init is a dummy (overwritten at iter 0)
    carry = lax.fori_loop(0, n_major, body, carry)
    for _ in range(n_rem):
        carry = one_step(carry)
    _, _, tau_m = carry

    # Last-iteration p_m (same values the final loop iteration computed),
    # matching the torch forward which returns the last-iteration clamp.
    o_ref[...] = jnp.clip(x - tau_m, 0.0, 1.0).astype(o_ref.dtype)


def budget_bisect(x, budget=2.0, dim=-1, n_iter=50, *, row_tile=4096, unroll=4):
    """Pallas implementation of budget-sparsemax forward (scalar budget only).

    n_iter defaults to 50 to match the torch module; for f32 inputs ~24-30
    iterations already reach machine precision and may be passed explicitly
    for ~1.6x speedup on this compute-bound kernel.
    """
    # TODO(synk): tensor-valued (per-row) budget not implemented; scalar only.
    orig_shape = x.shape
    ndim = x.ndim
    dim = dim % ndim
    d = orig_shape[dim]
    rows = x.size // d

    if n_iter <= 0:
        # Matches the zero-initialized p_m of the pure reference for n_iter=0.
        return jnp.zeros_like(x)

    kernel_common = dict(budget=float(budget), n_iter=int(n_iter),
                         d=float(d), unroll=int(unroll))
    compiler_params = pltpu.CompilerParams(
        dimension_semantics=("parallel",),
        vmem_limit_bytes=_VMEM_LIMIT_BYTES)

    lane_dense = (d % _LANE) != 0

    if lane_dense:
        # D small / not lane-aligned: put D on sublanes and rows on lanes, so
        # every vreg lane is used and the output store is a full-width vst.
        perm = [dim] + [i for i in range(ndim) if i != dim]
        identity_perm = perm == list(range(ndim))
        x_t = x if identity_perm else jnp.transpose(x, perm)   # (D, ...)
        x2 = x_t.reshape(d, rows)

        n_grp = pl.cdiv(rows, _LANE)                 # number of 128-row lane groups
        grp_cap = max(1, _BLOCK_BYTES_CAP // (d * 4 * _LANE))
        grp = max(1, min(row_tile // _LANE, n_grp, grp_cap))
        # v7x megacore: only split a single-step grid in two when each step
        # still keeps >= _MIN_GROUPS_PER_STEP lane-groups (~1024 rows); on
        # small inputs (and on single-TC v5e/v6e) one big step is faster.
        if grp >= n_grp and n_grp >= 2 * _MIN_GROUPS_PER_STEP:
            grp = pl.cdiv(n_grp, 2)
        tr = grp * _LANE
        grid = pl.cdiv(rows, tr)                     # ragged last block is masked

        kernel = functools.partial(_budget_bisect_kernel, red_axis=0,
                                   use_mxu=False, **kernel_common)
        out2 = pl.pallas_call(
            kernel,
            out_shape=jax.ShapeDtypeStruct((d, rows), x.dtype),
            grid_spec=pltpu.PrefetchScalarGridSpec(
                num_scalar_prefetch=0,
                grid=(grid,),
                in_specs=[pl.BlockSpec((d, tr), lambda i: (0, i))],
                out_specs=pl.BlockSpec((d, tr), lambda i: (0, i)),
            ),
            compiler_params=compiler_params,
        )(x2)

        out_t = out2.reshape(x_t.shape)
    else:
        # D already a multiple of 128: reduce directly over the lane axis.
        perm = [i for i in range(ndim) if i != dim] + [dim]
        identity_perm = perm == list(range(ndim))
        x_t = x if identity_perm else jnp.transpose(x, perm)   # (..., D)
        x2 = x_t.reshape(rows, d)

        tm_cap = max(_SUBLANE,
                     (_BLOCK_BYTES_CAP // (d * 4)) // _SUBLANE * _SUBLANE)
        rows_pad = pl.cdiv(rows, _SUBLANE) * _SUBLANE
        tm = max(_SUBLANE, min(row_tile, tm_cap, rows_pad))
        tm = (tm // _SUBLANE) * _SUBLANE
        # Only split a single-step grid for v7x megacore when each step still
        # has >= _MIN_ROWS_PER_STEP rows.
        if tm >= rows and rows >= 2 * _MIN_ROWS_PER_STEP:
            tm = pl.cdiv(pl.cdiv(rows, 2), _SUBLANE) * _SUBLANE
        grid = pl.cdiv(rows, tm)                     # ragged last block is masked

        kernel = functools.partial(_budget_bisect_kernel, red_axis=-1,
                                   use_mxu=True, **kernel_common)
        out2 = pl.pallas_call(
            kernel,
            out_shape=jax.ShapeDtypeStruct((rows, d), x.dtype),
            grid_spec=pltpu.PrefetchScalarGridSpec(
                num_scalar_prefetch=0,
                grid=(grid,),
                in_specs=[pl.BlockSpec((tm, d), lambda i: (i, 0))],
                out_specs=pl.BlockSpec((tm, d), lambda i: (i, 0)),
            ),
            compiler_params=compiler_params,
        )(x2)

        out_t = out2.reshape(x_t.shape)

    if identity_perm:
        return out_t
    inv_perm = [0] * ndim
    for i, p in enumerate(perm):
        inv_perm[p] = i
    return jnp.transpose(out_t, inv_perm)


class BudgetBisect:
    """JAX/Pallas counterpart of the PyTorch BudgetBisect module (forward only)."""

    def __init__(self, budget=2, dim=-1, n_iter=50):
        self.budget = budget
        self.dim = dim
        self.n_iter = n_iter

    def __call__(self, x):
        return budget_bisect(x, budget=self.budget, dim=self.dim,
                             n_iter=self.n_iter)


def _reference_budget_bisect(x, budget=2.0, dim=-1, n_iter=50):
    """Pure-JAX reference mirroring the PyTorch forward, for verification."""
    d = x.shape[dim]
    max_val = jnp.max(x, axis=dim, keepdims=True)
    min_val = jnp.min(x, axis=dim, keepdims=True)
    tau_lo = min_val - budget / d
    tau_hi = max_val - budget / d
    dm = tau_hi - tau_lo
    p_m = jnp.zeros_like(x)
    for _ in range(n_iter):
        dm = dm / 2
        tau_m = tau_lo + dm
        p_m = jnp.clip(x - tau_m, 0.0, 1.0)
        f_m = jnp.sum(p_m, axis=dim, keepdims=True) - budget
        tau_lo = jnp.where(f_m >= 0, tau_m, tau_lo)
    return p_m


if __name__ == "__main__":
    key = jax.random.PRNGKey(0)
    # Small NCHW-like input: batch=2, channels=4, H=16, W=16; dim=-1 (W axis).
    x = jax.random.normal(key, (2, 4, 16, 16), dtype=jnp.float32)

    mod = BudgetBisect(budget=2, dim=-1, n_iter=50)
    out = jax.block_until_ready(mod(x))

    ref = _reference_budget_bisect(x, budget=2.0, dim=-1, n_iter=50)

    assert out.shape == x.shape and out.dtype == x.dtype
    # Each row should sum to (approximately) the budget, and match the reference.
    assert jnp.allclose(out.sum(axis=-1), 2.0, atol=1e-4)
    assert jnp.allclose(out, ref, atol=1e-5)

    # Lane-aligned (D % 128 == 0) row-major path with the MXU reduction.
    x2 = jax.random.normal(jax.random.PRNGKey(1), (8, 256), dtype=jnp.float32)
    out2 = jax.block_until_ready(budget_bisect(x2, budget=2.0, dim=-1, n_iter=50))
    ref2 = _reference_budget_bisect(x2, budget=2.0, dim=-1, n_iter=50)
    assert jnp.allclose(out2, ref2, atol=1e-5)

    # Ragged lane-dense path (no explicit padding) with a non-trailing dim.
    x3 = jax.random.normal(jax.random.PRNGKey(2), (2, 4, 5, 10), dtype=jnp.float32)
    out3 = jax.block_until_ready(budget_bisect(x3, budget=2.0, dim=2, n_iter=50))
    ref3 = _reference_budget_bisect(x3, budget=2.0, dim=2, n_iter=50)
    assert jnp.allclose(out3, ref3, atol=1e-5)

    print("KERNEL_OK")
</pallas_src>

<mosaic_0001>
module attributes {stable_mosaic.version = 11 : i64} {
  func.func @_budget_bisect_kernel(%arg0: i32, %arg1: memref<16x128xf32, #tpu.memory_space<vmem>>, %arg2: memref<16x128xf32, #tpu.memory_space<vmem>>) attributes {dimension_semantics = [#tpu.dimension_semantics<parallel>], iteration_bounds = array<i64: 1>, scalar_prefetch = 0 : i64, scratch_operands = 0 : i64, tpu.core_type = #tpu.core_type<tc>, window_params = [{transform_indices = @transform_0, window_bounds = array<i64: 16, 128>}, {transform_indices = @transform_1, window_bounds = array<i64: 16, 128>}]} {
    %c0 = arith.constant 0 : index
    %c0_0 = arith.constant 0 : index
    %0 = vector.load %arg1[%c0, %c0_0] : memref<16x128xf32, #tpu.memory_space<vmem>>, vector<16x128xf32>
    %cst = arith.constant dense<0xFF800000> : vector<128xf32>
    %1 = vector.multi_reduction <maximumf>, %0, %cst [0] : vector<16x128xf32> to vector<128xf32>
    %2 = vector.shape_cast %1 : vector<128xf32> to vector<1x128xf32>
    %cst_1 = arith.constant dense<0x7F800000> : vector<128xf32>
    %3 = vector.multi_reduction <minimumf>, %0, %cst_1 [0] : vector<16x128xf32> to vector<128xf32>
    %4 = vector.shape_cast %3 : vector<128xf32> to vector<1x128xf32>
    %cst_2 = arith.constant 1.250000e-01 : f32
    %5 = vector.broadcast %cst_2 : f32 to vector<1x128xf32>
    %6 = arith.subf %4, %5 : vector<1x128xf32>
    %cst_3 = arith.constant 1.250000e-01 : f32
    %7 = vector.broadcast %cst_3 : f32 to vector<1x128xf32>
    %8 = arith.subf %2, %7 : vector<1x128xf32>
    %9 = arith.subf %8, %6 : vector<1x128xf32>
    %c0_i32 = arith.constant 0 : i32
    %c12_i32 = arith.constant 12 : i32
    %10 = arith.addi %c0_i32, %c12_i32 : i32
    %c1_i32 = arith.constant 1 : i32
    %11:2 = scf.for %arg3 = %c0_i32 to %10 step %c1_i32 iter_args(%arg4 = %6, %arg5 = %9) -> (vector<1x128xf32>, vector<1x128xf32>)  : i32 {
      %cst_14 = arith.constant 5.000000e-01 : f32
      %36 = vector.broadcast %cst_14 : f32 to vector<1x128xf32>
      %37 = arith.mulf %arg5, %36 : vector<1x128xf32>
      %38 = arith.addf %arg4, %37 : vector<1x128xf32>
      %39 = vector.broadcast %38 : vector<1x128xf32> to vector<16x128xf32>
      %40 = arith.subf %0, %39 : vector<16x128xf32>
      %cst_15 = arith.constant 0.000000e+00 : f32
      %cst_16 = arith.constant 1.000000e+00 : f32
      %41 = vector.broadcast %cst_15 : f32 to vector<16x128xf32>
      %42 = arith.maximumf %41, %40 : vector<16x128xf32>
      %43 = vector.broadcast %cst_16 : f32 to vector<16x128xf32>
      %44 = arith.minimumf %43, %42 : vector<16x128xf32>
      %cst_17 = arith.constant dense<0.000000e+00> : vector<128xf32>
      %45 = vector.multi_reduction <add>, %44, %cst_17 [0] : vector<16x128xf32> to vector<128xf32>
      %46 = vector.shape_cast %45 : vector<128xf32> to vector<1x128xf32>
      %cst_18 = arith.constant 2.000000e+00 : f32
      %47 = vector.broadcast %cst_18 : f32 to vector<1x128xf32>
      %48 = arith.cmpf oge, %46, %47 : vector<1x128xf32>
      %49 = arith.select %48, %38, %arg4 : vector<1x128xi1>, vector<1x128xf32>
      %cst_19 = arith.constant 5.000000e-01 : f32
      %50 = vector.broadcast %cst_19 : f32 to vector<1x128xf32>
      %51 = arith.mulf %37, %50 : vector<1x128xf32>
      %52 = arith.addf %49, %51 : vector<1x128xf32>
      %53 = vector.broadcast %52 : vector<1x128xf32> to vector<16x128xf32>
      %54 = arith.subf %0, %53 : vector<16x128xf32>
      %cst_20 = arith.constant 0.000000e+00 : f32
      %cst_21 = arith.constant 1.000000e+00 : f32
      %55 = vector.broadcast %cst_20 : f32 to vector<16x128xf32>
      %56 = arith.maximumf %55, %54 : vector<16x128xf32>
      %57 = vector.broadcast %cst_21 : f32 to vector<16x128xf32>
      %58 = arith.minimumf %57, %56 : vector<16x128xf32>
      %cst_22 = arith.constant dense<0.000000e+00> : vector<128xf32>
      %59 = vector.multi_reduction <add>, %58, %cst_22 [0] : vector<16x128xf32> to vector<128xf32>
      %60 = vector.shape_cast %59 : vector<128xf32> to vector<1x128xf32>
      %cst_23 = arith.constant 2.000000e+00 : f32
      %61 = vector.broadcast %cst_23 : f32 to vector<1x128xf32>
      %62 = arith.cmpf oge, %60, %61 : vector<1x128xf32>
      %63 = arith.select %62, %52, %49 : vector<1x128xi1>, vector<1x128xf32>
      %cst_24 = arith.constant 5.000000e-01 : f32
      %64 = vector.broadcast %cst_24 : f32 to vector<1x128xf32>
      %65 = arith.mulf %51, %64 : vector<1x128xf32>
      %66 = arith.addf %63, %65 : vector<1x128xf32>
      %67 = vector.broadcast %66 : vector<1x128xf32> to vector<16x128xf32>
      %68 = arith.subf %0, %67 : vector<16x128xf32>
      %cst_25 = arith.constant 0.000000e+00 : f32
      %cst_26 = arith.constant 1.000000e+00 : f32
      %69 = vector.broadcast %cst_25 : f32 to vector<16x128xf32>
      %70 = arith.maximumf %69, %68 : vector<16x128xf32>
      %71 = vector.broadcast %cst_26 : f32 to vector<16x128xf32>
      %72 = arith.minimumf %71, %70 : vector<16x128xf32>
      %cst_27 = arith.constant dense<0.000000e+00> : vector<128xf32>
      %73 = vector.multi_reduction <add>, %72, %cst_27 [0] : vector<16x128xf32> to vector<128xf32>
      %74 = vector.shape_cast %73 : vector<128xf32> to vector<1x128xf32>
      %cst_28 = arith.constant 2.000000e+00 : f32
      %75 = vector.broadcast %cst_28 : f32 to vector<1x128xf32>
      %76 = arith.cmpf oge, %74, %75 : vector<1x128xf32>
      %77 = arith.select %76, %66, %63 : vector<1x128xi1>, vector<1x128xf32>
      %cst_29 = arith.constant 5.000000e-01 : f32
      %78 = vector.broadcast %cst_29 : f32 to vector<1x128xf32>
      %79 = arith.mulf %65, %78 : vector<1x128xf32>
      %80 = arith.addf %77, %79 : vector<1x128xf32>
      %81 = vector.broadcast %80 : vector<1x128xf32> to vector<16x128xf32>
      %82 = arith.subf %0, %81 : vector<16x128xf32>
      %cst_30 = arith.constant 0.000000e+00 : f32
      %cst_31 = arith.constant 1.000000e+00 : f32
      %83 = vector.broadcast %cst_30 : f32 to vector<16x128xf32>
      %84 = arith.maximumf %83, %82 : vector<16x128xf32>
      %85 = vector.broadcast %cst_31 : f32 to vector<16x128xf32>
      %86 = arith.minimumf %85, %84 : vector<16x128xf32>
      %cst_32 = arith.constant dense<0.000000e+00> : vector<128xf32>
      %87 = vector.multi_reduction <add>, %86, %cst_32 [0] : vector<16x128xf32> to vector<128xf32>
      %88 = vector.shape_cast %87 : vector<128xf32> to vector<1x128xf32>
      %cst_33 = arith.constant 2.000000e+00 : f32
      %89 = vector.broadcast %cst_33 : f32 to vector<1x128xf32>
      %90 = arith.cmpf oge, %88, %89 : vector<1x128xf32>
      %91 = arith.select %90, %80, %77 : vector<1x128xi1>, vector<1x128xf32>
      scf.yield %91, %79 : vector<1x128xf32>, vector<1x128xf32>
    }
    %cst_4 = arith.constant 5.000000e-01 : f32
    %12 = vector.broadcast %cst_4 : f32 to vector<1x128xf32>
    %13 = arith.mulf %11#1, %12 : vector<1x128xf32>
    %14 = arith.addf %11#0, %13 : vector<1x128xf32>
    %15 = vector.broadcast %14 : vector<1x128xf32> to vector<16x128xf32>
    %16 = arith.subf %0, %15 : vector<16x128xf32>
    %cst_5 = arith.constant 0.000000e+00 : f32
    %cst_6 = arith.constant 1.000000e+00 : f32
    %17 = vector.broadcast %cst_5 : f32 to vector<16x128xf32>
    %18 = arith.maximumf %17, %16 : vector<16x128xf32>
    %19 = vector.broadcast %cst_6 : f32 to vector<16x128xf32>
    %20 = arith.minimumf %19, %18 : vector<16x128xf32>
    %cst_7 = arith.constant dense<0.000000e+00> : vector<128xf32>
    %21 = vector.multi_reduction <add>, %20, %cst_7 [0] : vector<16x128xf32> to vector<128xf32>
    %22 = vector.shape_cast %21 : vector<128xf32> to vector<1x128xf32>
    %cst_8 = arith.constant 2.000000e+00 : f32
    %23 = vector.broadcast %cst_8 : f32 to vector<1x128xf32>
    %24 = arith.cmpf oge, %22, %23 : vector<1x128xf32>
    %25 = arith.select %24, %14, %11#0 : vector<1x128xi1>, vector<1x128xf32>
    %cst_9 = arith.constant 5.000000e-01 : f32
    %26 = vector.broadcast %cst_9 : f32 to vector<1x128xf32>
    %27 = arith.mulf %13, %26 : vector<1x128xf32>
    %28 = arith.addf %25, %27 : vector<1x128xf32>
    %29 = vector.broadcast %28 : vector<1x128xf32> to vector<16x128xf32>
    %30 = arith.subf %0, %29 : vector<16x128xf32>
    %cst_10 = arith.constant 0.000000e+00 : f32
    %cst_11 = arith.constant 1.000000e+00 : f32
    %31 = vector.broadcast %cst_10 : f32 to vector<16x128xf32>
    %32 = arith.maximumf %31, %30 : vector<16x128xf32>
    %33 = vector.broadcast %cst_11 : f32 to vector<16x128xf32>
    %34 = arith.minimumf %33, %32 : vector<16x128xf32>
    %c0_12 = arith.constant 0 : index
    %c0_13 = arith.constant 0 : index
    %35 = vector.load %arg2[%c0_12, %c0_13] : memref<16x128xf32, #tpu.memory_space<vmem>>, vector<16x128xf32>
    tpu.vector_store %arg2[%c0_12, %c0_13], %34 {strides = array<i32>} : memref<16x128xf32, #tpu.memory_space<vmem>>, vector<16x128xf32>,
    return
  }
  func.func @transform_0(%arg0: i32) -> (i32, i32) {
    %c0_i32 = arith.constant 0 : i32
    %c0_i32_0 = arith.constant 0 : i32
    return %c0_i32, %arg0 : i32, i32
  }
  func.func @transform_1(%arg0: i32) -> (i32, i32) {
    %c0_i32 = arith.constant 0 : i32
    %c0_i32_0 = arith.constant 0 : i32
    return %c0_i32, %arg0 : i32, i32
  }
}

</mosaic_0001>

<llo_original>
// kernel: tpu_custom_call.1
$region0: #{tpu_custom_call.1}
  #allocation0 [shape = 'u32[]', space=smem, size = 0x4, offset = 0x4, fixed_abs, tag = 'smem constant byte address 0x4 - core index']
  #allocation1 [shape = 'u32[72,128]{1,0:T(1,128)}', space=vmem, size = 0x9000, scoped, tag = 'internal scratch']
  %s0 = inlined_call_operand.hbm [shape: f32[16,128], index: 0, kind: input, shape index: {}]
  %s1 = inlined_call_operand.hbm [shape: f32[16,128], index: 1, kind: output, shape index: {}]
  %s2 = sld [smem:[#allocation0]]
  $region25: #{tpu_custom_call.1} parent=0
    _
  %s4 = ssub.s32 1, %s2
  %s5 = scalar_select 0, %s4, %s2
  $region1: #{tpu_custom_call.1} parent=0
    #allocation2 [shape = 'u8[8192]{0}', space=vmem, size = 0x2000, scoped, tag = 'input window, operand 0, single buffered']
    #allocation3 [shape = 's32[1]{0}', space=sflag, size = 0x4, scoped, tag = 'scoped memory for tpu_custom_call.1']
    #allocation4 [shape = 's32[1]{0}', space=sflag, size = 0x4, scoped, tag = 'scoped memory for tpu_custom_call.1']
    #allocation5 [shape = 'u8[8192]{0}', space=vmem, size = 0x2000, scoped, tag = 'output window, operand 0, single buffered']
    %6 = vsyncpa [#allocation3], 0
    %7 = vsyncpa [#allocation4], 0
    // Predicated region
    $region2: #{tpu_custom_call.1} parent=1 // pred_check
      _
    $region3: #{tpu_custom_call.1} parent=1 // pred_check_branch
      %9 = sbr.rel (0) target = $region5
    $region4: #{tpu_custom_call.1} parent=1 // pred_region
      %11 = vsyncadd [#allocation3], 0
      %s12 = sshll.u32 %s0, 4
      %s13 = int_to_ptr.hbm [resolvable:$true] %s12
      %s14 = sshll.u32 [#allocation2], 4
      %s15 = int_to_ptr.vmem [resolvable:$true] %s14
      %20 = dma.hbm_to_vmem [thread:$0]  %s13, 256, %s15, [#allocation3], 128, 128, 8
    $region5: #{tpu_custom_call.1} parent=1 // pred_fallthru
      _
    // Predicated region
    $region6: #{tpu_custom_call.1} parent=1 // pred_check
      _
    $region7: #{tpu_custom_call.1} parent=1 // pred_check_branch
      %22 = sbr.rel (0) target = $region9
    $region8: #{tpu_custom_call.1} parent=1 // pred_region
      %24 = dma.done [#allocation3], 256
    $region9: #{tpu_custom_call.1} parent=1 // pred_fallthru
      _
    %v25 = vld [vmem:[#allocation2] sm:$0xff]
    %v26 = vld [vmem:[#allocation2 + $0x8] sm:$0xff]
    %v27 = vmax.f32 %v25, %v26
    %v28 = vrot.slane %v27, 4
    %v29 = vmax.f32 %v27, %v28
    %v30 = vrot.slane %v29, 2
    %v31 = vmax.f32 %v29, %v30
    %v32 = vrot.slane %v31, 1
    %v33 = vmax.f32 %v31, %v32
    %v34 = vmin.f32 %v25, %v26
    %v35 = vrot.slane %v34, 4
    %v36 = vmin.f32 %v34, %v35
    %v37 = vrot.slane %v36, 2
    %v38 = vmin.f32 %v36, %v37
    %v39 = vrot.slane %v38, 1
    %v40 = vmin.f32 %v38, %v39
    %v41 = vsub.f32 %v40, 0.125
    %v42 = vsub.f32 %v33, 0.125
    %v43 = vsub.f32 %v42, %v41
    loop: start=0, step=1, limit=12
    $region10: #{tpu_custom_call.1} parent=1 // loop_pre_header
      _
    $region11: #{tpu_custom_call.1} parent=1 // loop_header
      %s45 = sphi 0, %s49
      %p46 = scmp.ge.s32.totalorder %s45, 12
      %v50 = vphi %v41, %v119
      %v51 = vphi %v43, %v103
    $region12: #{tpu_custom_call.1} parent=1 // loop_header_branch
      %48 = sbr.rel (%p46) target = $region16
    $region13: #{tpu_custom_call.1} parent=1 // loop_body
      %v52 = vmul.f32 %v51, 0.5
      %v53 = vadd.f32 %v50, %v52
      %v54 = vsub.f32 %v25, %v53
      %v55 = vsub.f32 %v26, %v53
      %v56 = vmax.f32 %v54, 0.0
      %v57 = vmax.f32 %v55, 0.0
      %v58 = vmin.f32 %v56, 1.0
      %v59 = vmin.f32 %v57, 1.0
      %v60 = vadd.f32 %v58, %v59
      %v61 = vrot.slane %v60, 4
      %v62 = vadd.f32 %v60, %v61
      %v63 = vrot.slane %v62, 2
      %v64 = vadd.f32 %v62, %v63
      %v65 = vrot.slane %v64, 1
      %v66 = vadd.f32 %v64, %v65
      %vm67 = vcmp.ge.f32.partialorder %v66, 2.0
      %v68 = vsel %vm67, %v53, %v50
      %v69 = vmul.f32 %v52, 0.5
      %v70 = vadd.f32 %v68, %v69
      %v71 = vsub.f32 %v25, %v70
      %v72 = vsub.f32 %v26, %v70
      %v73 = vmax.f32 %v71, 0.0
      %v74 = vmax.f32 %v72, 0.0
      %v75 = vmin.f32 %v73, 1.0
      %v76 = vmin.f32 %v74, 1.0
      %v77 = vadd.f32 %v75, %v76
      %v78 = vrot.slane %v77, 4
      %v79 = vadd.f32 %v77, %v78
      %v80 = vrot.slane %v79, 2
      %v81 = vadd.f32 %v79, %v80
      %v82 = vrot.slane %v81, 1
      %v83 = vadd.f32 %v81, %v82
      %vm84 = vcmp.ge.f32.partialorder %v83, 2.0
      %v85 = vsel %vm84, %v70, %v68
      %v86 = vmul.f32 %v69, 0.5
      %v87 = vadd.f32 %v85, %v86
      %v88 = vsub.f32 %v25, %v87
      %v89 = vsub.f32 %v26, %v87
      %v90 = vmax.f32 %v88, 0.0
      %v91 = vmax.f32 %v89, 0.0
      %v92 = vmin.f32 %v90, 1.0
      %v93 = vmin.f32 %v91, 1.0
      %v94 = vadd.f32 %v92, %v93
      %v95 = vrot.slane %v94, 4
      %v96 = vadd.f32 %v94, %v95
      %v97 = vrot.slane %v96, 2
      %v98 = vadd.f32 %v96, %v97
      %v99 = vrot.slane %v98, 1
      %v100 = vadd.f32 %v98, %v99
      %vm101 = vcmp.ge.f32.partialorder %v100, 2.0
      %v102 = vsel %vm101, %v87, %v85
      %v103 = vmul.f32 %v86, 0.5
      %v104 = vadd.f32 %v102, %v103
      %v105 = vsub.f32 %v25, %v104
      %v106 = vsub.f32 %v26, %v104
      %v107 = vmax.f32 %v105, 0.0
      %v108 = vmax.f32 %v106, 0.0
      %v109 = vmin.f32 %v107, 1.0
      %v110 = vmin.f32 %v108, 1.0
      %v111 = vadd.f32 %v109, %v110
      %v112 = vrot.slane %v111, 4
      %v113 = vadd.f32 %v111, %v112
      %v114 = vrot.slane %v113, 2
      %v115 = vadd.f32 %v113, %v114
      %v116 = vrot.slane %v115, 1
      %v117 = vadd.f32 %v115, %v116
      %vm118 = vcmp.ge.f32.partialorder %v117, 2.0
      %v119 = vsel %vm118, %v104, %v102
    $region14: #{tpu_custom_call.1} parent=1 // loop_footer
      %s49 = sadd.s32 1, %s45
    $region15: #{tpu_custom_call.1} parent=1 // loop_footer_branch
      %44 = sbr.rel target = $region11
    $region16: #{tpu_custom_call.1} parent=1 // loop_exit
      _
    %v120 = vmul.f32 %v51, 0.5
    %v121 = vadd.f32 %v50, %v120
    %v122 = vsub.f32 %v25, %v121
    %v123 = vsub.f32 %v26, %v121
    %v124 = vmax.f32 %v122, 0.0
    %v125 = vmax.f32 %v123, 0.0
    %v126 = vmin.f32 %v124, 1.0
    %v127 = vmin.f32 %v125, 1.0
    %v128 = vadd.f32 %v126, %v127
    %v129 = vrot.slane %v128, 4
    %v130 = vadd.f32 %v128, %v129
    %v131 = vrot.slane %v130, 2
    %v132 = vadd.f32 %v130, %v131
    %v133 = vrot.slane %v132, 1
    %v134 = vadd.f32 %v132, %v133
    %vm135 = vcmp.ge.f32.partialorder %v134, 2.0
    %v136 = vsel %vm135, %v121, %v50
    %v137 = vmul.f32 %v120, 0.5
    %v138 = vadd.f32 %v136, %v137
    %v139 = vsub.f32 %v25, %v138
    %v140 = vsub.f32 %v26, %v138
    %v141 = vmax.f32 %v139, 0.0
    %v142 = vmax.f32 %v140, 0.0
    %v143 = vmin.f32 %v141, 1.0
    %v144 = vmin.f32 %v142, 1.0
    %145 = vst [vmem:[#allocation5] sm:$0xff] %v143
    %146 = vst [vmem:[#allocation5 + $0x8] sm:$0xff] %v144
    // Predicated region
    $region17: #{tpu_custom_call.1} parent=1 // pred_check
      _
    $region18: #{tpu_custom_call.1} parent=1 // pred_check_branch
      %148 = sbr.rel (0) target = $region20
    $region19: #{tpu_custom_call.1} parent=1 // pred_region
      %150 = vsyncadd [#allocation4], 0
      %s151 = sshll.u32 [#allocation5], 4
      %s152 = int_to_ptr.vmem [resolvable:$true] %s151
      %s153 = sshll.u32 %s1, 4
      %s154 = int_to_ptr.hbm [resolvable:$true] %s153
      %159 = dma.vmem_to_hbm [thread:$0]  %s152, 256, %s154, [#allocation4], 128, 128, 8
    $region20: #{tpu_custom_call.1} parent=1 // pred_fallthru
      _
    // Predicated region
    $region21: #{tpu_custom_call.1} parent=1 // pred_check
      _
    $region22: #{tpu_custom_call.1} parent=1 // pred_check_branch
      %161 = sbr.rel (0) target = $region24
    $region23: #{tpu_custom_call.1} parent=1 // pred_region
      %163 = dma.done [#allocation4], 256
    $region24: #{tpu_custom_call.1} parent=1 // pred_fallthru
      _
    %164 = vsyncpa [#allocation3], 1
    %165 = vsyncpa [#allocation4], 1

</llo_original>
